<compile_context>
chip_gen: v6e
topology: v6e:2x2x1
jax: 0.10.0
libtpu: 0.0.40
codegen_flags: <defaults>
</compile_context>

<pallas_src>
import functools

import jax
import jax.numpy as jnp
from jax.experimental import pallas as pl
from jax.experimental.pallas import tpu as pltpu

EPS = 1e-5


def _double_conv_kernel(x_ref, bw1_ref, bw2_ref, bnp_ref, o_ref, *, H, Cmid, Cout):
    NH = x_ref.shape[0]
    WCmid = bw1_ref.shape[1]
    WCout = bw2_ref.shape[1]
    N = NH // H
    W = WCmid // Cmid
    inv_npix = 1.0 / float(NH * W)            # pixels per channel = N*H*W

    # ---- H-shift operators, built once and shared by both convs -------------
    # (s_up @ y)[n*H+h] = y[n*H+h-1]  (zero at h == 0)
    # (s_dn @ y)[n*H+h] = y[n*H+h+1]  (zero at h == H-1)
    # Exact 0/1 matrices from iota -> tiny MXU matmuls; removes the scratch
    # round trip / misaligned sublane slices of the previous version.
    # TODO(synk): at real tile sizes replace with pltpu.roll on the sublane axis
    # + a boundary-row mask (the O((N*H)^2) shift matrices do not scale).
    i = jax.lax.broadcasted_iota(jnp.int32, (NH, NH), 0)
    j = jax.lax.broadcasted_iota(jnp.int32, (NH, NH), 1)
    h_i = jax.lax.broadcasted_iota(jnp.int32, (N, H, NH), 1).reshape(NH, NH)
    s_up = ((j == i - 1) & (h_i > 0)).astype(jnp.float32)
    s_dn = ((j == i + 1) & (h_i < H - 1)).astype(jnp.float32)

    def conv(y, bw_ref):
        # Single bf16 MXU matmul per conv: KH taps K-stacked on the contraction
        # axis; KW taps + W zero padding are pre-folded into the banded weight.
        up = jnp.dot(s_up, y, preferred_element_type=jnp.float32)
        dn = jnp.dot(s_dn, y, preferred_element_type=jnp.float32)
        lhs = jnp.concatenate([up, y, dn], axis=1).astype(jnp.bfloat16)
        return jnp.dot(lhs, bw_ref[...], preferred_element_type=jnp.float32)

    def spread_group_sum(v, C):
        # v: (1, W*C).  Per-channel totals broadcast back to every lane of that
        # channel via a cyclic lane-roll reduction (XLU; direction-agnostic).
        WC = v.shape[-1]
        W_ = WC // C
        if (W_ & (W_ - 1)) == 0:              # power-of-two W: log2(W) rolls
            shift = C
            while shift < WC:
                v = v + pltpu.roll(v, shift, 1)
                shift *= 2
            return v
        out = v                               # generic fallback: W-1 rolls
        for k in range(1, W_):
            out = out + pltpu.roll(v, k * C, 1)
        return out

    def bn_relu(acc, C, g_l, be_l):
        # Training-mode batch statistics over (N, H, W); biased variance.
        s = jnp.sum(acc, axis=0, keepdims=True)            # (1, W*C)
        q = jnp.sum(acc * acc, axis=0, keepdims=True)      # (1, W*C)
        mean_l = spread_group_sum(s, C) * inv_npix
        var_l = spread_group_sum(q, C) * inv_npix - mean_l * mean_l
        # TODO(synk): one-pass E[x^2]-E[x]^2 can cancel badly at scale; use a
        # shifted / two-pass formulation for real sizes.
        scale_l = g_l * jax.lax.rsqrt(var_l + EPS)          # rsqrt -> EUP
        shift_l = be_l - mean_l * scale_l
        return jnp.maximum(acc * scale_l + shift_l, 0.0)

    g1_l = bnp_ref[0:1, :WCmid]
    be1_l = bnp_ref[1:2, :WCmid]
    g2_l = bnp_ref[2:3, :WCout]
    be2_l = bnp_ref[3:4, :WCout]

    h1 = bn_relu(conv(x_ref[...], bw1_ref), Cmid, g1_l, be1_l)      # (NH, W*Cmid)
    o_ref[...] = bn_relu(conv(h1, bw2_ref), Cout, g2_l, be2_l)      # lane-dense store


def _banded_weight(w_hwio, W):
    """Fold KW taps and the W-axis zero padding (padding=1) into a K-stacked
    banded matrix:

      bw[kh*W*Cin + wq*Cin + ci, wo*Cout + co] = w[kh, wq-wo+1, ci, co]
      (zero outside 0 <= wq-wo+1 < KW)

    so a whole conv is one matmul (N*H, KH*W*Cin) @ (KH*W*Cin, W*Cout), where
    the lhs K-stacks the three H-shifted copies of the input rows.
    """
    KH, KW, Cin, Cout = w_hwio.shape
    wq = jnp.arange(W)[:, None]                       # source column
    wo = jnp.arange(W)[None, :]                       # output column
    kw = wq - wo + 1                                  # padding = 1
    valid = ((kw >= 0) & (kw < KW)).astype(w_hwio.dtype)
    bw = w_hwio[:, jnp.clip(kw, 0, KW - 1), :, :]     # (KH, wq, wo, Cin, Cout)
    bw = bw * valid[None, :, :, None, None]
    bw = jnp.transpose(bw, (0, 1, 3, 2, 4))           # (KH, wq, Cin, wo, Cout)
    return bw.reshape(KH * W * Cin, W * Cout).astype(jnp.bfloat16)


def prepare_params(w1, b1, g1, be1, w2, b2, g2, be2, W):
    """One-time parameter packing, hoisted out of the per-call hot path.

    Conv biases b1/b2 are accepted for nn.Conv2d interface parity but unused:
    a per-channel constant bias cancels exactly under training-mode
    (batch-statistic) BatchNorm.  NOTE: not valid with eval-mode running stats.
    """
    del b1, b2
    Cmid, Cout = w1.shape[-1], w2.shape[-1]
    bw1 = _banded_weight(w1.astype(jnp.float32), W)   # (3*W*Cin,  W*Cmid) bf16
    bw2 = _banded_weight(w2.astype(jnp.float32), W)   # (3*W*Cmid, W*Cout) bf16
    WCmax = W * max(Cmid, Cout)

    def lane_spread(v):                               # per-channel -> (w, c) lanes
        v = jnp.tile(v.astype(jnp.float32), W)
        return jnp.pad(v, (0, WCmax - v.shape[0]))

    bnp = jnp.stack([lane_spread(g1), lane_spread(be1),
                     lane_spread(g2), lane_spread(be2)])            # (4, WCmax)
    return bw1, bw2, bnp


@jax.jit
def double_conv(x_nchw, bw1, bw2, bnp):
    """x_nchw: (N, Cin, H, W) f32; bw1/bw2/bnp from prepare_params -> (N, Cout, H, W)."""
    N, Cin, H, W = x_nchw.shape
    Cmid = bw1.shape[1] // W
    Cout = bw2.shape[1] // W

    # NCHW -> fused lane-dense (N*H, W*Cin) layout.
    # TODO(synk): in a full NHWC pipeline keep activations in this layout across
    # layers and drop the NCHW<->NHWC transposes entirely.
    x = jnp.transpose(x_nchw, (0, 2, 3, 1)).astype(jnp.float32).reshape(N * H, W * Cin)

    kernel = functools.partial(_double_conv_kernel, H=H, Cmid=Cmid, Cout=Cout)
    vmem = pl.BlockSpec(memory_space=pltpu.MemorySpace.VMEM)
    y = pl.pallas_call(
        kernel,
        out_shape=jax.ShapeDtypeStruct((N * H, W * Cout), jnp.float32),
        in_specs=[vmem, vmem, vmem, vmem],
        out_specs=vmem,
        # Working set << 1 MiB at this size; default scoped-VMEM budget is ample.
        # TODO(synk): for real sizes add a spatially-tiled "parallel" grid
        # (v7x megacore) and derive the VMEM budget per chip generation.
    )(x, bw1, bw2, bnp)

    out = y.reshape(N, H, W, Cout)                    # lane-dense -> NHWC
    return jnp.transpose(out, (0, 3, 1, 2))           # back to NCHW


def ref_double_conv(x_nchw, w1, b1, g1, be1, w2, b2, g2, be2):
    """Pure-JAX f32 reference with the same semantics (includes conv biases)."""
    x = jnp.transpose(x_nchw, (0, 2, 3, 1)).astype(jnp.float32)

    def conv(y, w, b):
        return jax.lax.conv_general_dilated(
            y, w, window_strides=(1, 1), padding=[(1, 1), (1, 1)],
            dimension_numbers=("NHWC", "HWIO", "NHWC")) + b

    def bn_relu(y, g, be):
        mean = jnp.mean(y, axis=(0, 1, 2), keepdims=True)
        var = jnp.mean((y - mean) ** 2, axis=(0, 1, 2), keepdims=True)
        return jnp.maximum((y - mean) * jax.lax.rsqrt(var + EPS) * g + be, 0.0)

    h = bn_relu(conv(x, w1, b1), g1, be1)
    o = bn_relu(conv(h, w2, b2), g2, be2)
    return jnp.transpose(o, (0, 3, 1, 2))


if __name__ == "__main__":
    # DoubleConv(in_channels=4, out_channels=8, kernel_size=3) -> mid_channels=8
    N, Cin, H, W = 2, 4, 16, 16
    Cmid, Cout, K = 8, 8, 3

    key = jax.random.PRNGKey(0)
    kx, kw1, kb1, kw2, kb2 = jax.random.split(key, 5)

    x = jax.random.normal(kx, (N, Cin, H, W), jnp.float32)

    # Deterministic synthetic parameters (Conv weights in HWIO layout).
    w1 = 0.1 * jax.random.normal(kw1, (K, K, Cin, Cmid), jnp.float32)
    b1 = 0.05 * jax.random.normal(kb1, (Cmid,), jnp.float32)
    g1 = jnp.ones((Cmid,), jnp.float32)      # BatchNorm weight (PyTorch init)
    be1 = jnp.zeros((Cmid,), jnp.float32)    # BatchNorm bias   (PyTorch init)

    w2 = 0.1 * jax.random.normal(kw2, (K, K, Cmid, Cout), jnp.float32)
    b2 = 0.05 * jax.random.normal(kb2, (Cout,), jnp.float32)
    g2 = jnp.ones((Cout,), jnp.float32)
    be2 = jnp.zeros((Cout,), jnp.float32)

    # One-time packing (banded bf16 weights + lane-spread BN params).
    bw1, bw2, bnp = jax.block_until_ready(
        prepare_params(w1, b1, g1, be1, w2, b2, g2, be2, W))

    out = jax.block_until_ready(double_conv(x, bw1, bw2, bnp))
    assert out.shape == (N, Cout, H, W)

    ref = jax.block_until_ready(ref_double_conv(x, w1, b1, g1, be1, w2, b2, g2, be2))
    # bf16 MXU operands (per perf review) -> looser tolerance vs. the f32 ref.
    err = float(jnp.max(jnp.abs(out - ref)))
    assert jnp.allclose(out, ref, rtol=5e-2, atol=8e-2), err

    print("KERNEL_OK")
</pallas_src>

<mosaic_0001>
module attributes {stable_mosaic.version = 11 : i64} {
  func.func @_double_conv_kernel(%arg0: memref<32x64xf32, #tpu.memory_space<vmem>>, %arg1: memref<192x128xbf16, #tpu.memory_space<vmem>>, %arg2: memref<384x128xbf16, #tpu.memory_space<vmem>>, %arg3: memref<4x128xf32, #tpu.memory_space<vmem>>, %arg4: memref<32x128xf32, #tpu.memory_space<vmem>>) attributes {dimension_semantics = [], scalar_prefetch = 0 : i64, scratch_operands = 0 : i64, tpu.core_type = #tpu.core_type<tc>} {
    %0 = tpu.iota {dimensions = array<i32: 0>} : vector<32x32xi32>
    %1 = tpu.iota {dimensions = array<i32: 1>} : vector<32x32xi32>
    %2 = tpu.iota {dimensions = array<i32: 1>} : vector<2x16x32xi32>
    %3 = vector.shape_cast %2 : vector<2x16x32xi32> to vector<32x32xi32>
    %c1_i32 = arith.constant 1 : i32
    %4 = vector.broadcast %c1_i32 : i32 to vector<32x32xi32>
    %5 = arith.subi %0, %4 : vector<32x32xi32>
    %6 = arith.cmpi eq, %1, %5 : vector<32x32xi32>
    %c0_i32 = arith.constant 0 : i32
    %7 = vector.broadcast %c0_i32 : i32 to vector<32x32xi32>
    %8 = arith.cmpi sgt, %3, %7 : vector<32x32xi32>
    %9 = arith.andi %6, %8 : vector<32x32xi1>
    %10 = arith.extui %9 : vector<32x32xi1> to vector<32x32xi32>
    %11 = arith.sitofp %10 : vector<32x32xi32> to vector<32x32xf32>
    %c1_i32_0 = arith.constant 1 : i32
    %12 = vector.broadcast %c1_i32_0 : i32 to vector<32x32xi32>
    %13 = arith.addi %0, %12 : vector<32x32xi32>
    %14 = arith.cmpi eq, %1, %13 : vector<32x32xi32>
    %c15_i32 = arith.constant 15 : i32
    %15 = vector.broadcast %c15_i32 : i32 to vector<32x32xi32>
    %16 = arith.cmpi slt, %3, %15 : vector<32x32xi32>
    %17 = arith.andi %14, %16 : vector<32x32xi1>
    %18 = arith.extui %17 : vector<32x32xi1> to vector<32x32xi32>
    %19 = arith.sitofp %18 : vector<32x32xi32> to vector<32x32xf32>
    %c0 = arith.constant 0 : index
    %c0_1 = arith.constant 0 : index
    %20 = vector.load %arg3[%c0, %c0_1] : memref<4x128xf32, #tpu.memory_space<vmem>>, vector<1x128xf32>
    %c1 = arith.constant 1 : index
    %c0_2 = arith.constant 0 : index
    %21 = vector.load %arg3[%c1, %c0_2] : memref<4x128xf32, #tpu.memory_space<vmem>>, vector<1x128xf32>
    %c2 = arith.constant 2 : index
    %c0_3 = arith.constant 0 : index
    %22 = vector.load %arg3[%c2, %c0_3] : memref<4x128xf32, #tpu.memory_space<vmem>>, vector<1x128xf32>
    %c3 = arith.constant 3 : index
    %c0_4 = arith.constant 0 : index
    %23 = vector.load %arg3[%c3, %c0_4] : memref<4x128xf32, #tpu.memory_space<vmem>>, vector<1x128xf32>
    %c0_5 = arith.constant 0 : index
    %c0_6 = arith.constant 0 : index
    %24 = vector.load %arg0[%c0_5, %c0_6] : memref<32x64xf32, #tpu.memory_space<vmem>>, vector<32x64xf32>
    %cst = arith.constant dense<0.000000e+00> : vector<32x64xf32>
    %25 = tpu.matmul %11, %24, %cst {dimension_numbers = #tpu.dot_dimension_numbers<[1], [0], [0], [1], [0, 0, 1, 1], [], []>} : vector<32x32xf32>, vector<32x64xf32>, vector<32x64xf32> -> vector<32x64xf32>
    %cst_7 = arith.constant dense<0.000000e+00> : vector<32x64xf32>
    %26 = tpu.matmul %19, %24, %cst_7 {dimension_numbers = #tpu.dot_dimension_numbers<[1], [0], [0], [1], [0, 0, 1, 1], [], []>} : vector<32x32xf32>, vector<32x64xf32>, vector<32x64xf32> -> vector<32x64xf32>
    %27 = tpu.concatenate %25, %24, %26 in 1 : vector<32x64xf32>, vector<32x64xf32>, vector<32x64xf32> -> vector<32x192xf32>
    %28 = arith.truncf %27 : vector<32x192xf32> to vector<32x192xbf16>
    %c0_8 = arith.constant 0 : index
    %c0_9 = arith.constant 0 : index
    %29 = vector.load %arg1[%c0_8, %c0_9] : memref<192x128xbf16, #tpu.memory_space<vmem>>, vector<192x128xbf16>
    %cst_10 = arith.constant dense<0.000000e+00> : vector<32x128xf32>
    %30 = tpu.matmul %28, %29, %cst_10 {dimension_numbers = #tpu.dot_dimension_numbers<[1], [0], [0], [1], [0, 0, 1, 1], [], []>} : vector<32x192xbf16>, vector<192x128xbf16>, vector<32x128xf32> -> vector<32x128xf32>
    %cst_11 = arith.constant dense<0.000000e+00> : vector<128xf32>
    %31 = vector.multi_reduction <add>, %30, %cst_11 [0] : vector<32x128xf32> to vector<128xf32>
    %32 = vector.shape_cast %31 : vector<128xf32> to vector<1x128xf32>
    %33 = arith.mulf %30, %30 : vector<32x128xf32>
    %cst_12 = arith.constant dense<0.000000e+00> : vector<128xf32>
    %34 = vector.multi_reduction <add>, %33, %cst_12 [0] : vector<32x128xf32> to vector<128xf32>
    %35 = vector.shape_cast %34 : vector<128xf32> to vector<1x128xf32>
    %c8_i32 = arith.constant 8 : i32
    %36 = tpu.dynamic_rotate %32 by %c8_i32 dim 1 : vector<1x128xf32>, i32 -> vector<1x128xf32>
    %37 = arith.addf %32, %36 : vector<1x128xf32>
    %c16_i32 = arith.constant 16 : i32
    %38 = tpu.dynamic_rotate %37 by %c16_i32 dim 1 : vector<1x128xf32>, i32 -> vector<1x128xf32>
    %39 = arith.addf %37, %38 : vector<1x128xf32>
    %c32_i32 = arith.constant 32 : i32
    %40 = tpu.dynamic_rotate %39 by %c32_i32 dim 1 : vector<1x128xf32>, i32 -> vector<1x128xf32>
    %41 = arith.addf %39, %40 : vector<1x128xf32>
    %c64_i32 = arith.constant 64 : i32
    %42 = tpu.dynamic_rotate %41 by %c64_i32 dim 1 : vector<1x128xf32>, i32 -> vector<1x128xf32>
    %43 = arith.addf %41, %42 : vector<1x128xf32>
    %cst_13 = arith.constant 0.001953125 : f32
    %44 = vector.broadcast %cst_13 : f32 to vector<1x128xf32>
    %45 = arith.mulf %43, %44 : vector<1x128xf32>
    %c8_i32_14 = arith.constant 8 : i32
    %46 = tpu.dynamic_rotate %35 by %c8_i32_14 dim 1 : vector<1x128xf32>, i32 -> vector<1x128xf32>
    %47 = arith.addf %35, %46 : vector<1x128xf32>
    %c16_i32_15 = arith.constant 16 : i32
    %48 = tpu.dynamic_rotate %47 by %c16_i32_15 dim 1 : vector<1x128xf32>, i32 -> vector<1x128xf32>
    %49 = arith.addf %47, %48 : vector<1x128xf32>
    %c32_i32_16 = arith.constant 32 : i32
    %50 = tpu.dynamic_rotate %49 by %c32_i32_16 dim 1 : vector<1x128xf32>, i32 -> vector<1x128xf32>
    %51 = arith.addf %49, %50 : vector<1x128xf32>
    %c64_i32_17 = arith.constant 64 : i32
    %52 = tpu.dynamic_rotate %51 by %c64_i32_17 dim 1 : vector<1x128xf32>, i32 -> vector<1x128xf32>
    %53 = arith.addf %51, %52 : vector<1x128xf32>
    %cst_18 = arith.constant 0.001953125 : f32
    %54 = vector.broadcast %cst_18 : f32 to vector<1x128xf32>
    %55 = arith.mulf %53, %54 : vector<1x128xf32>
    %56 = arith.mulf %45, %45 : vector<1x128xf32>
    %57 = arith.subf %55, %56 : vector<1x128xf32>
    %cst_19 = arith.constant 9.99999974E-6 : f32
    %58 = vector.broadcast %cst_19 : f32 to vector<1x128xf32>
    %59 = arith.addf %57, %58 : vector<1x128xf32>
    %60 = math.rsqrt %59 : vector<1x128xf32>
    %61 = arith.mulf %20, %60 : vector<1x128xf32>
    %62 = arith.mulf %45, %61 : vector<1x128xf32>
    %63 = arith.subf %21, %62 : vector<1x128xf32>
    %64 = vector.broadcast %61 : vector<1x128xf32> to vector<32x128xf32>
    %65 = arith.mulf %30, %64 : vector<32x128xf32>
    %66 = vector.broadcast %63 : vector<1x128xf32> to vector<32x128xf32>
    %67 = arith.addf %65, %66 : vector<32x128xf32>
    %cst_20 = arith.constant 0.000000e+00 : f32
    %68 = vector.broadcast %cst_20 : f32 to vector<32x128xf32>
    %69 = arith.maximumf %67, %68 : vector<32x128xf32>
    %cst_21 = arith.constant dense<0.000000e+00> : vector<32x128xf32>
    %70 = tpu.matmul %11, %69, %cst_21 {dimension_numbers = #tpu.dot_dimension_numbers<[1], [0], [0], [1], [0, 0, 1, 1], [], []>} : vector<32x32xf32>, vector<32x128xf32>, vector<32x128xf32> -> vector<32x128xf32>
    %cst_22 = arith.constant dense<0.000000e+00> : vector<32x128xf32>
    %71 = tpu.matmul %19, %69, %cst_22 {dimension_numbers = #tpu.dot_dimension_numbers<[1], [0], [0], [1], [0, 0, 1, 1], [], []>} : vector<32x32xf32>, vector<32x128xf32>, vector<32x128xf32> -> vector<32x128xf32>
    %72 = tpu.concatenate %70, %69, %71 in 1 : vector<32x128xf32>, vector<32x128xf32>, vector<32x128xf32> -> vector<32x384xf32>
    %73 = arith.truncf %72 : vector<32x384xf32> to vector<32x384xbf16>
    %c0_23 = arith.constant 0 : index
    %c0_24 = arith.constant 0 : index
    %74 = vector.load %arg2[%c0_23, %c0_24] : memref<384x128xbf16, #tpu.memory_space<vmem>>, vector<384x128xbf16>
    %cst_25 = arith.constant dense<0.000000e+00> : vector<32x128xf32>
    %75 = tpu.matmul %73, %74, %cst_25 {dimension_numbers = #tpu.dot_dimension_numbers<[1], [0], [0], [1], [0, 0, 1, 1], [], []>} : vector<32x384xbf16>, vector<384x128xbf16>, vector<32x128xf32> -> vector<32x128xf32>
    %cst_26 = arith.constant dense<0.000000e+00> : vector<128xf32>
    %76 = vector.multi_reduction <add>, %75, %cst_26 [0] : vector<32x128xf32> to vector<128xf32>
    %77 = vector.shape_cast %76 : vector<128xf32> to vector<1x128xf32>
    %78 = arith.mulf %75, %75 : vector<32x128xf32>
    %cst_27 = arith.constant dense<0.000000e+00> : vector<128xf32>
    %79 = vector.multi_reduction <add>, %78, %cst_27 [0] : vector<32x128xf32> to vector<128xf32>
    %80 = vector.shape_cast %79 : vector<128xf32> to vector<1x128xf32>
    %c8_i32_28 = arith.constant 8 : i32
    %81 = tpu.dynamic_rotate %77 by %c8_i32_28 dim 1 : vector<1x128xf32>, i32 -> vector<1x128xf32>
    %82 = arith.addf %77, %81 : vector<1x128xf32>
    %c16_i32_29 = arith.constant 16 : i32
    %83 = tpu.dynamic_rotate %82 by %c16_i32_29 dim 1 : vector<1x128xf32>, i32 -> vector<1x128xf32>
    %84 = arith.addf %82, %83 : vector<1x128xf32>
    %c32_i32_30 = arith.constant 32 : i32
    %85 = tpu.dynamic_rotate %84 by %c32_i32_30 dim 1 : vector<1x128xf32>, i32 -> vector<1x128xf32>
    %86 = arith.addf %84, %85 : vector<1x128xf32>
    %c64_i32_31 = arith.constant 64 : i32
    %87 = tpu.dynamic_rotate %86 by %c64_i32_31 dim 1 : vector<1x128xf32>, i32 -> vector<1x128xf32>
    %88 = arith.addf %86, %87 : vector<1x128xf32>
    %cst_32 = arith.constant 0.001953125 : f32
    %89 = vector.broadcast %cst_32 : f32 to vector<1x128xf32>
    %90 = arith.mulf %88, %89 : vector<1x128xf32>
    %c8_i32_33 = arith.constant 8 : i32
    %91 = tpu.dynamic_rotate %80 by %c8_i32_33 dim 1 : vector<1x128xf32>, i32 -> vector<1x128xf32>
    %92 = arith.addf %80, %91 : vector<1x128xf32>
    %c16_i32_34 = arith.constant 16 : i32
    %93 = tpu.dynamic_rotate %92 by %c16_i32_34 dim 1 : vector<1x128xf32>, i32 -> vector<1x128xf32>
    %94 = arith.addf %92, %93 : vector<1x128xf32>
    %c32_i32_35 = arith.constant 32 : i32
    %95 = tpu.dynamic_rotate %94 by %c32_i32_35 dim 1 : vector<1x128xf32>, i32 -> vector<1x128xf32>
    %96 = arith.addf %94, %95 : vector<1x128xf32>
    %c64_i32_36 = arith.constant 64 : i32
    %97 = tpu.dynamic_rotate %96 by %c64_i32_36 dim 1 : vector<1x128xf32>, i32 -> vector<1x128xf32>
    %98 = arith.addf %96, %97 : vector<1x128xf32>
    %cst_37 = arith.constant 0.001953125 : f32
    %99 = vector.broadcast %cst_37 : f32 to vector<1x128xf32>
    %100 = arith.mulf %98, %99 : vector<1x128xf32>
    %101 = arith.mulf %90, %90 : vector<1x128xf32>
    %102 = arith.subf %100, %101 : vector<1x128xf32>
    %cst_38 = arith.constant 9.99999974E-6 : f32
    %103 = vector.broadcast %cst_38 : f32 to vector<1x128xf32>
    %104 = arith.addf %102, %103 : vector<1x128xf32>
    %105 = math.rsqrt %104 : vector<1x128xf32>
    %106 = arith.mulf %22, %105 : vector<1x128xf32>
    %107 = arith.mulf %90, %106 : vector<1x128xf32>
    %108 = arith.subf %23, %107 : vector<1x128xf32>
    %109 = vector.broadcast %106 : vector<1x128xf32> to vector<32x128xf32>
    %110 = arith.mulf %75, %109 : vector<32x128xf32>
    %111 = vector.broadcast %108 : vector<1x128xf32> to vector<32x128xf32>
    %112 = arith.addf %110, %111 : vector<32x128xf32>
    %cst_39 = arith.constant 0.000000e+00 : f32
    %113 = vector.broadcast %cst_39 : f32 to vector<32x128xf32>
    %114 = arith.maximumf %112, %113 : vector<32x128xf32>
    %c0_40 = arith.constant 0 : index
    %c0_41 = arith.constant 0 : index
    %115 = vector.load %arg4[%c0_40, %c0_41] : memref<32x128xf32, #tpu.memory_space<vmem>>, vector<32x128xf32>
    tpu.vector_store %arg4[%c0_40, %c0_41], %114 {strides = array<i32>} : memref<32x128xf32, #tpu.memory_space<vmem>>, vector<32x128xf32>,
    return
  }
}

</mosaic_0001>

<llo_original>
// kernel: double_conv.1
$region0: #{double_conv.1}
  #allocation0 [shape = 'u32[]', space=smem, size = 0x4, offset = 0x4, fixed_abs, tag = 'smem constant byte address 0x4 - core index']
  #allocation1 [shape = 'u32[144,128]{1,0:T(1,128)}', space=vmem, size = 0x12000, scoped, tag = 'internal scratch']
  %s0 = inlined_call_operand.vmem [shape: f32[32,64], index: 0, kind: input, shape index: {}]
  %s1 = inlined_call_operand.vmem [shape: bf16[192,128], index: 1, kind: input, shape index: {}]
  %s2 = inlined_call_operand.vmem [shape: bf16[384,128], index: 2, kind: input, shape index: {}]
  %s3 = inlined_call_operand.vmem [shape: f32[4,128], index: 3, kind: input, shape index: {}]
  %s4 = inlined_call_operand.vmem [shape: f32[32,128], index: 4, kind: output, shape index: {}]
  %s5 = sld [smem:[#allocation0]]
  $region26: #{double_conv.1} parent=0
    _
  %s7 = ssub.s32 1, %s5
  %s8 = scalar_select 0, %s7, %s5
  // Predicated region
  $region2: #{double_conv.1} parent=0 // pred_check
    _
  $region3: #{double_conv.1} parent=0 // pred_check_branch
    %10 = sbr.rel (0) target = $region5
  $region4: #{double_conv.1} parent=0 // pred_region
    _
  $region5: #{double_conv.1} parent=0 // pred_fallthru
    _
  // Predicated region
  $region6: #{double_conv.1} parent=0 // pred_check
    _
  $region7: #{double_conv.1} parent=0 // pred_check_branch
    %12 = sbr.rel (0) target = $region9
  $region8: #{double_conv.1} parent=0 // pred_region
    _
  $region9: #{double_conv.1} parent=0 // pred_fallthru
    _
  // Predicated region
  $region10: #{double_conv.1} parent=0 // pred_check
    _
  $region11: #{double_conv.1} parent=0 // pred_check_branch
    %14 = sbr.rel (0) target = $region13
  $region12: #{double_conv.1} parent=0 // pred_region
    _
  $region13: #{double_conv.1} parent=0 // pred_fallthru
    _
  // Predicated region
  $region14: #{double_conv.1} parent=0 // pred_check
    _
  $region15: #{double_conv.1} parent=0 // pred_check_branch
    %16 = sbr.rel (0) target = $region17
  $region16: #{double_conv.1} parent=0 // pred_region
    _
  $region17: #{double_conv.1} parent=0 // pred_fallthru
    _
  %v18 = vlaneseq
  %v19 = vshrl.u32 %v18, 7
  %v20 = vadd.s32 %v19, 8
  %v21 = vadd.s32 %v19, 16
  %v22 = vadd.s32 %v19, 24
  %v23 = vlaneseq
  %v24 = vand.u32 %v23, 127
  %v25 = vsub.s32 %v19, 1
  %v26 = vsub.s32 %v20, 1
  %v27 = vsub.s32 %v21, 1
  %v28 = vsub.s32 %v22, 1
  %vm29 = vcmp.eq.s32.totalorder %v24, %v25
  %vm30 = vcmp.eq.s32.totalorder %v24, %v26
  %vm31 = vcmp.eq.s32.totalorder %v24, %v27
  %vm32 = vcmp.eq.s32.totalorder %v24, %v28
  %vm33 = vcmp.gt.s32.totalorder %v19, 0
  %vm34 = vcmp.gt.s32.totalorder %v20, 0
  %vm35 = vmand %vm29, %vm33
  %vm36 = vmand %vm30, %vm34
  %vm37 = vmand %vm31, %vm33
  %vm38 = vmand %vm32, %vm34
  %v39 = vsel %vm35, 1, 0
  %v40 = vsel %vm36, 1, 0
  %v41 = vsel %vm37, 1, 0
  %v42 = vsel %vm38, 1, 0
  %v43 = vcvt.s32.f32 %v39
  %v44 = vcvt.s32.f32 %v40
  %v45 = vcvt.s32.f32 %v41
  %v46 = vcvt.s32.f32 %v42
  %v47 = vadd.s32 %v19, 1
  %v48 = vadd.s32 %v20, 1
  %v49 = vadd.s32 %v21, 1
  %v50 = vadd.s32 %v22, 1
  %vm51 = vcmp.eq.s32.totalorder %v24, %v47
  %vm52 = vcmp.eq.s32.totalorder %v24, %v48
  %vm53 = vcmp.eq.s32.totalorder %v24, %v49
  %vm54 = vcmp.eq.s32.totalorder %v24, %v50
  %vm55 = vcmp.lt.s32.totalorder %v19, 15
  %vm56 = vcmp.lt.s32.totalorder %v20, 15
  %vm57 = vmand %vm51, %vm55
  %vm58 = vmand %vm52, %vm56
  %vm59 = vmand %vm53, %vm55
  %vm60 = vmand %vm54, %vm56
  %v61 = vsel %vm57, 1, 0
  %v62 = vsel %vm58, 1, 0
  %v63 = vsel %vm59, 1, 0
  %v64 = vsel %vm60, 1, 0
  %v65 = vcvt.s32.f32 %v61
  %v66 = vcvt.s32.f32 %v62
  %v67 = vcvt.s32.f32 %v63
  %v68 = vcvt.s32.f32 %v64
  %v69 = vld [vmem:[%s3] sm:$0x1]
  %v70 = vld [vmem:[%s3 + $0x1] sm:$0x1]
  %v71 = vld [vmem:[%s3 + $0x2] sm:$0x1]
  %v72 = vld [vmem:[%s3 + $0x3] sm:$0x1]
  %v73 = vld [vmem:[%s0] sm:$0xff]
  %v74 = vld [vmem:[%s0 + $0x8] sm:$0xff]
  %v75 = vld [vmem:[%s0 + $0x10] sm:$0xff]
  %v76 = vld [vmem:[%s0 + $0x18] sm:$0xff]
  %vm77 = vcmask 261120
  %v79 = vsel %vm77, %v43, 0
  %v82 = vsel %vm77, %v44, 0
  %v85 = vsel %vm77, %v45, 0
  %v88 = vsel %vm77, %v46, 0
  %90 = vmatprep.subr.mxu0 0.0
  %91 = vmatpush1.msra.mxu0 0.0
  %92 = vmatprep.subr.mxu0 0.0
  %93 = vmatpush1.msra.mxu0 0.0
  %94 = vmatprep.subr.mxu0 0.0
  %95 = vmatpush1.msra.mxu0 0.0
  %96 = vmatprep.subr.mxu0 0.0
  %97 = vmatpush1.msra.mxu0 0.0
  %98 = vmatprep.subr.mxu0 0.0
  %99 = vmatpush1.msra.mxu0 0.0
  %100 = vmatprep.subr.mxu0 0.0
  %101 = vmatpush1.msra.mxu0 0.0
  %102 = vmatprep.subr.mxu0 0.0
  %103 = vmatpush1.msra.mxu0 0.0
  %104 = vmatprep.subr.mxu0 0.0
  %105 = vmatpush1.msra.mxu0 0.0
  %106 = vmatprep.subr.mxu0 0.0
  %107 = vmatpush1.msra.mxu0 0.0
  %108 = vmatprep.subr.mxu0 0.0
  %109 = vmatpush1.msra.mxu0 0.0
  %110 = vmatprep.subr.mxu0 0.0
  %111 = vmatpush1.msra.mxu0 0.0
  %112 = vmatprep.subr.mxu0 0.0
  %113 = vmatpush1.msra.mxu0 0.0
  %114 = vmatprep.subr.mxu0 0.0
  %115 = vmatpush1.msra.mxu0 %v76
  %116 = vmatprep.subr.mxu0 0.0
  %117 = vmatpush1.msra.mxu0 %v75
  %118 = vmatprep.subr.mxu0 0.0
  %119 = vmatpush1.msra.mxu0 %v74
  %120 = vmatprep.subr.mxu0 0.0
  %121 = vmatpush1.msra.mxu0 %v73
  %122 = vmatprep.subr.mxu0 0.0
  %123 = vmatpush2.msra.mxu0 0.0
  %124 = vmatprep.subr.mxu0 0.0
  %125 = vmatpush2.msra.mxu0 0.0
  %126 = vmatprep.subr.mxu0 0.0
  %127 = vmatpush2.msra.mxu0 0.0
  %128 = vmatprep.subr.mxu0 0.0
  %129 = vmatpush2.msra.mxu0 0.0
  %130 = vmatprep.subr.mxu0 0.0
  %131 = vmatpush2.msra.mxu0 0.0
  %132 = vmatprep.subr.mxu0 0.0
  %133 = vmatpush2.msra.mxu0 0.0
  %134 = vmatprep.subr.mxu0 0.0
  %135 = vmatpush2.msra.mxu0 0.0
  %136 = vmatprep.subr.mxu0 0.0
  %137 = vmatpush2.msra.mxu0 0.0
  %138 = vmatprep.subr.mxu0 0.0
  %139 = vmatpush2.msra.mxu0 0.0
  %140 = vmatprep.subr.mxu0 0.0
  %141 = vmatpush2.msra.mxu0 0.0
  %142 = vmatprep.subr.mxu0 0.0
  %143 = vmatpush2.msra.mxu0 0.0
  %144 = vmatprep.subr.mxu0 0.0
  %145 = vmatpush2.msra.mxu0 0.0
  %146 = vmatprep.subr.mxu0 0.0
  %147 = vmatpush2.msra.mxu0 0.0
  %148 = vmatprep.subr.mxu0 0.0
  %149 = vmatpush2.msra.mxu0 0.0
  %150 = vmatprep.subr.mxu0 0.0
  %151 = vmatpush2.msra.mxu0 0.0
  %152 = vmatprep.subr.mxu0 0.0
  %153 = vmatpush2.msra.mxu0 0.0
  %154 = vmatprep.mubr.f32.mxu0 0.0
  %155 = vmatmul.mubr.f32.gmra.mxu0 %v79
  %v156 = vpop.f32.mrf.mxu0
  %v157 = vadd.f32 0.0, %v156
  %v158 = vpop.f32.mrf.mxu0
  %159 = vmatprep.mubr.f32.mxu0 0.0
  %160 = vmatmul.mubr.f32.gmra.mxu0 %v82
  %v161 = vpop.f32.mrf.mxu0
  %v162 = vadd.f32 0.0, %v161
  %v163 = vpop.f32.mrf.mxu0
  %164 = vmatprep.mubr.f32.mxu0 0.0
  %165 = vmatmul.mubr.f32.gmra.mxu0 %v85
  %v166 = vpop.f32.mrf.mxu0
  %v167 = vadd.f32 0.0, %v166
  %v168 = vpop.f32.mrf.mxu0
  %169 = vmatprep.mubr.f32.mxu0 0.0
  %170 = vmatmul.mubr.f32.gmra.mxu0 %v88
  %v171 = vpop.f32.mrf.mxu0
  %v172 = vadd.f32 0.0, %v171
  %v173 = vpop.f32.mrf.mxu0
  %174 = vdwg.mxu0
  %v176 = vsel %vm77, %v65, 0
  %v179 = vsel %vm77, %v66, 0
  %v182 = vsel %vm77, %v67, 0
  %v185 = vsel %vm77, %v68, 0
  %187 = vmatprep.subr.mxu0 0.0
  %188 = vmatpush1.msra.mxu0 0.0
  %189 = vmatprep.subr.mxu0 0.0
  %190 = vmatpush1.msra.mxu0 0.0
  %191 = vmatprep.subr.mxu0 0.0
  %192 = vmatpush1.msra.mxu0 0.0
  %193 = vmatprep.subr.mxu0 0.0
  %194 = vmatpush1.msra.mxu0 0.0
  %195 = vmatprep.subr.mxu0 0.0
  %196 = vmatpush1.msra.mxu0 0.0
  %197 = vmatprep.subr.mxu0 0.0
  %198 = vmatpush1.msra.mxu0 0.0
  %199 = vmatprep.subr.mxu0 0.0
  %200 = vmatpush1.msra.mxu0 0.0
  %201 = vmatprep.subr.mxu0 0.0
  %202 = vmatpush1.msra.mxu0 0.0
  %203 = vmatprep.subr.mxu0 0.0
  %204 = vmatpush1.msra.mxu0 0.0
  %205 = vmatprep.subr.mxu0 0.0
  %206 = vmatpush1.msra.mxu0 0.0
  %207 = vmatprep.subr.mxu0 0.0
  %208 = vmatpush1.msra.mxu0 0.0
  %209 = vmatprep.subr.mxu0 0.0
  %210 = vmatpush1.msra.mxu0 0.0
  %211 = vmatprep.subr.mxu0 0.0
  %212 = vmatpush1.msra.mxu0 %v76
  %213 = vmatprep.subr.mxu0 0.0
  %214 = vmatpush1.msra.mxu0 %v75
  %215 = vmatprep.subr.mxu0 0.0
  %216 = vmatpush1.msra.mxu0 %v74
  %217 = vmatprep.subr.mxu0 0.0
  %218 = vmatpush1.msra.mxu0 %v73
  %219 = vmatprep.subr.mxu0 0.0
  %220 = vmatpush2.msra.mxu0 0.0
  %221 = vmatprep.subr.mxu0 0.0
  %222 = vmatpush2.msra.mxu0 0.0
  %223 = vmatprep.subr.mxu0 0.0
  %224 = vmatpush2.msra.mxu0 0.0
  %225 = vmatprep.subr.mxu0 0.0
  %226 = vmatpush2.msra.mxu0 0.0
  %227 = vmatprep.subr.mxu0 0.0
  %228 = vmatpush2.msra.mxu0 0.0
  %229 = vmatprep.subr.mxu0 0.0
  %230 = vmatpush2.msra.mxu0 0.0
  %231 = vmatprep.subr.mxu0 0.0
  %232 = vmatpush2.msra.mxu0 0.0
  %233 = vmatprep.subr.mxu0 0.0
  %234 = vmatpush2.msra.mxu0 0.0
  %235 = vmatprep.subr.mxu0 0.0
  %236 = vmatpush2.msra.mxu0 0.0
  %237 = vmatprep.subr.mxu0 0.0
  %238 = vmatpush2.msra.mxu0 0.0
  %239 = vmatprep.subr.mxu0 0.0
  %240 = vmatpush2.msra.mxu0 0.0
  %241 = vmatprep.subr.mxu0 0.0
  %242 = vmatpush2.msra.mxu0 0.0
  %243 = vmatprep.subr.mxu0 0.0
  %244 = vmatpush2.msra.mxu0 0.0
  %245 = vmatprep.subr.mxu0 0.0
  %246 = vmatpush2.msra.mxu0 0.0
  %247 = vmatprep.subr.mxu0 0.0
  %248 = vmatpush2.msra.mxu0 0.0
  %249 = vmatprep.subr.mxu0 0.0
  %250 = vmatpush2.msra.mxu0 0.0
  %251 = vmatprep.mubr.f32.mxu0 0.0
  %252 = vmatmul.mubr.f32.gmra.mxu0 %v176
  %v253 = vpop.f32.mrf.mxu0
  %v254 = vadd.f32 0.0, %v253
  %v255 = vpop.f32.mrf.mxu0
  %256 = vmatprep.mubr.f32.mxu0 0.0
  %257 = vmatmul.mubr.f32.gmra.mxu0 %v179
  %v258 = vpop.f32.mrf.mxu0
  %v259 = vadd.f32 0.0, %v258
  %v260 = vpop.f32.mrf.mxu0
  %261 = vmatprep.mubr.f32.mxu0 0.0
  %262 = vmatmul.mubr.f32.gmra.mxu0 %v182
  %v263 = vpop.f32.mrf.mxu0
  %v264 = vadd.f32 0.0, %v263
  %v265 = vpop.f32.mrf.mxu0
  %266 = vmatprep.mubr.f32.mxu0 0.0
  %267 = vmatmul.mubr.f32.gmra.mxu0 %v185
  %v268 = vpop.f32.mrf.mxu0
  %v269 = vadd.f32 0.0, %v268
  %v270 = vpop.f32.mrf.mxu0
  %271 = vdwg.mxu0
  %276 = vrot.lane.b32.xlu0 %v73, 64
  %v277 = vpop.permute.xlu0 %276
  %278 = vrot.lane.b32.xlu0 %v74, 64
  %v279 = vpop.permute.xlu0 %278
  %280 = vrot.lane.b32.xlu0 %v75, 64
  %v281 = vpop.permute.xlu0 %280
  %282 = vrot.lane.b32.xlu0 %v76, 64
  %v283 = vpop.permute.xlu0 %282
  %vm288 = vcmask 523264
  %v289 = vsel %vm288, %v157, %v277
  %v290 = vsel %vm288, %v162, %v279
  %v291 = vsel %vm288, %v167, %v281
  %v292 = vsel %vm288, %v172, %v283
  %v293 = vpack.c.bf16 %v290, %v289
  %v294 = vpack.c.bf16 %v259, %v254
  %v295 = vpack.c.bf16 %v292, %v291
  %v296 = vpack.c.bf16 %v269, %v264
  %v297 = vld [vmem:[%s1] sm:$0xf]
  %v298 = vld [vmem:[%s1 + $0x4] sm:$0xf]
  %v299 = vld [vmem:[%s1 + $0x8] sm:$0xf]
  %v300 = vld [vmem:[%s1 + $0xc] sm:$0xf]
  %v301 = vld [vmem:[%s1 + $0x10] sm:$0xf]
  %v302 = vld [vmem:[%s1 + $0x14] sm:$0xf]
  %v303 = vld [vmem:[%s1 + $0x18] sm:$0xf]
  %v304 = vld [vmem:[%s1 + $0x1c] sm:$0xf]
  %v305 = vld [vmem:[%s1 + $0x20] sm:$0xf]
  %v306 = vld [vmem:[%s1 + $0x24] sm:$0xf]
  %v307 = vld [vmem:[%s1 + $0x28] sm:$0xf]
  %v308 = vld [vmem:[%s1 + $0x2c] sm:$0xf]
  %v309 = vld [vmem:[%s1 + $0x30] sm:$0xf]
  %v310 = vld [vmem:[%s1 + $0x34] sm:$0xf]
  %v311 = vld [vmem:[%s1 + $0x38] sm:$0xf]
  %v312 = vld [vmem:[%s1 + $0x3c] sm:$0xf]
  %v313 = vld [vmem:[%s1 + $0x40] sm:$0xf]
  %v314 = vld [vmem:[%s1 + $0x44] sm:$0xf]
  %v315 = vld [vmem:[%s1 + $0x48] sm:$0xf]
  %v316 = vld [vmem:[%s1 + $0x4c] sm:$0xf]
  %v317 = vld [vmem:[%s1 + $0x50] sm:$0xf]
  %v318 = vld [vmem:[%s1 + $0x54] sm:$0xf]
  %v319 = vld [vmem:[%s1 + $0x58] sm:$0xf]
  %v320 = vld [vmem:[%s1 + $0x5c] sm:$0xf]
  %v345 = vunpack.c.l.b16 %v297
  %v346 = vunpack.c.l.b16 %v298
  %v347 = vunpack.c.l.b16 %v299
  %v348 = vunpack.c.l.b16 %v300
  %v349 = vunpack.c.l.b16 %v301
  %v350 = vunpack.c.l.b16 %v302
  %v351 = vunpack.c.l.b16 %v303
  %v352 = vunpack.c.l.b16 %v304
  %v353 = vunpack.c.l.b16 %v305
  %v354 = vunpack.c.l.b16 %v306
  %v355 = vunpack.c.l.b16 %v307
  %v356 = vunpack.c.l.b16 %v308
  %v357 = vunpack.c.l.b16 %v309
  %v358 = vunpack.c.l.b16 %v310
  %v359 = vunpack.c.l.b16 %v311
  %v360 = vunpack.c.l.b16 %v312
  %v361 = vunpack.c.l.b16 %v313
  %v362 = vunpack.c.l.b16 %v314
  %v363 = vunpack.c.l.b16 %v315
  %v364 = vunpack.c.l.b16 %v316
  %v365 = vunpack.c.l.b16 %v317
  %v366 = vunpack.c.l.b16 %v318
  %v367 = vunpack.c.l.b16 %v319
  %v368 = vunpack.c.l.b16 %v320
  %v369 = vpack.c.b16 %v346, %v345
  %v370 = vpack.c.b16 %v348, %v347
  %v371 = vpack.c.b16 %v350, %v349
  %v372 = vpack.c.b16 %v352, %v351
  %v373 = vpack.c.b16 %v354, %v353
  %v374 = vpack.c.b16 %v356, %v355
  %v375 = vpack.c.b16 %v358, %v357
  %v376 = vpack.c.b16 %v360, %v359
  %v377 = vpack.c.b16 %v362, %v361
  %v378 = vpack.c.b16 %v364, %v363
  %v379 = vpack.c.b16 %v366, %v365
  %v380 = vpack.c.b16 %v368, %v367
  %v394 = vsel %vm288, %v294, 0
  %v397 = vsel %vm288, %v296, 0
  %399 = vmatprep.subr.bf16.mxu0 0
  %400 = vmatpush1.bf16.msra.mxu0 %v376
  %401 = vmatprep.subr.bf16.mxu0 0
  %402 = vmatpush1.bf16.msra.mxu0 %v375
  %403 = vmatprep.subr.bf16.mxu0 0
  %404 = vmatpush1.bf16.msra.mxu0 %v374
  %405 = vmatprep.subr.bf16.mxu0 0
  %406 = vmatpush1.bf16.msra.mxu0 %v373
  %407 = vmatprep.subr.bf16.mxu0 0
  %408 = vmatpush1.bf16.msra.mxu0 %v372
  %409 = vmatprep.subr.bf16.mxu0 0
  %410 = vmatpush1.bf16.msra.mxu0 %v371
  %411 = vmatprep.subr.bf16.mxu0 0
  %412 = vmatpush1.bf16.msra.mxu0 %v370
  %413 = vmatprep.subr.bf16.mxu0 0
  %414 = vmatpush1.bf16.msra.mxu0 %v369
  %415 = vmatprep.subr.bf16.mxu0 0
  %416 = vmatpush2.bf16.msra.mxu0 0
  %417 = vmatprep.subr.bf16.mxu0 0
  %418 = vmatpush2.bf16.msra.mxu0 0
  %419 = vmatprep.subr.bf16.mxu0 0
  %420 = vmatpush2.bf16.msra.mxu0 0
  %421 = vmatprep.subr.bf16.mxu0 0
  %422 = vmatpush2.bf16.msra.mxu0 0
  %423 = vmatprep.subr.bf16.mxu0 0
  %424 = vmatpush2.bf16.msra.mxu0 %v380
  %425 = vmatprep.subr.bf16.mxu0 0
  %426 = vmatpush2.bf16.msra.mxu0 %v379
  %427 = vmatprep.subr.bf16.mxu0 0
  %428 = vmatpush2.bf16.msra.mxu0 %v378
  %429 = vmatprep.subr.bf16.mxu0 0
  %430 = vmatpush2.bf16.msra.mxu0 %v377
  %431 = vmatprep.mubr.bf16.mxu0 %v394
  %432 = vmatmul.mubr.bf16.gmra.mxu0 %v293
  %v433 = vpop.f32.mrf.mxu0
  %v434 = vadd.f32 0.0, %v433
  %v435 = vpop.f32.mrf.mxu0
  %v436 = vpop.f32.mrf.mxu0
  %v437 = vadd.f32 0.0, %v436
  %v438 = vpop.f32.mrf.mxu0
  %439 = vmatprep.mubr.bf16.mxu0 %v397
  %440 = vmatmul.mubr.bf16.gmra.mxu0 %v295
  %v441 = vpop.f32.mrf.mxu0
  %v442 = vadd.f32 0.0, %v441
  %v443 = vpop.f32.mrf.mxu0
  %v444 = vpop.f32.mrf.mxu0
  %v445 = vadd.f32 0.0, %v444
  %v446 = vpop.f32.mrf.mxu0
  %447 = vdwg.mxu0
  %v448 = vadd.f32 %v434, %v437
  %v449 = vadd.f32 %v448, %v442
  %v450 = vadd.f32 %v449, %v445
  %v451 = vrot.slane %v450, 4
  %v452 = vadd.f32 %v450, %v451
  %v453 = vrot.slane %v452, 2
  %v454 = vadd.f32 %v452, %v453
  %v455 = vrot.slane %v454, 1
  %v456 = vadd.f32 %v454, %v455
  %v457 = vmul.f32 %v434, %v434
  %v458 = vmul.f32 %v437, %v437
  %v459 = vmul.f32 %v442, %v442
  %v460 = vmul.f32 %v445, %v445
  %v461 = vadd.f32 %v457, %v458
  %v462 = vadd.f32 %v461, %v459
  %v463 = vadd.f32 %v462, %v460
  %v464 = vrot.slane %v463, 4
  %v465 = vadd.f32 %v463, %v464
  %v466 = vrot.slane %v465, 2
  %v467 = vadd.f32 %v465, %v466
  %v468 = vrot.slane %v467, 1
  %v469 = vadd.f32 %v467, %v468
  %470 = vrot.lane.b32.xlu0 %v456, 8
  %v471 = vpop.permute.xlu0 %470
  %v472 = vadd.f32 %v456, %v471
  %473 = vrot.lane.b32.xlu0 %v472, 16
  %v474 = vpop.permute.xlu0 %473
  %v475 = vadd.f32 %v472, %v474
  %476 = vrot.lane.b32.xlu0 %v475, 32
  %v477 = vpop.permute.xlu0 %476
  %v478 = vadd.f32 %v475, %v477
  %479 = vrot.lane.b32.xlu0 %v478, 64
  %v480 = vpop.permute.xlu0 %479
  %v481 = vadd.f32 %v478, %v480
  %v482 = vmul.f32 %v481, 0.001953125
  %483 = vrot.lane.b32.xlu0 %v469, 8
  %v484 = vpop.permute.xlu0 %483
  %v485 = vadd.f32 %v469, %v484
  %486 = vrot.lane.b32.xlu0 %v485, 16
  %v487 = vpop.permute.xlu0 %486
  %v488 = vadd.f32 %v485, %v487
  %489 = vrot.lane.b32.xlu0 %v488, 32
  %v490 = vpop.permute.xlu0 %489
  %v491 = vadd.f32 %v488, %v490
  %492 = vrot.lane.b32.xlu0 %v491, 64
  %v493 = vpop.permute.xlu0 %492
  %v494 = vadd.f32 %v491, %v493
  %v495 = vmul.f32 %v494, 0.001953125
  %v496 = vmul.f32 %v482, %v482
  %v497 = vsub.f32 %v495, %v496
  %v498 = vadd.f32 %v497, 1e-05
  %v499 = vrsqrt.pop %v498
  %v500 = vmul.f32 %v69, %v499
  %v501 = vmul.f32 %v482, %v500
  %v502 = vsub.f32 %v70, %v501
  %v503 = vlaneseq
  %v504 = vshrl.u32 %v503, 7
  %v505 = vsub.s32 0, %v504
  %v506 = vrot.slane %v500, %v505
  %v507 = vmul.f32 %v434, %v506
  %v508 = vmul.f32 %v437, %v506
  %v509 = vmul.f32 %v442, %v506
  %v510 = vmul.f32 %v445, %v506
  %v511 = vlaneseq
  %v512 = vshrl.u32 %v511, 7
  %v513 = vsub.s32 0, %v512
  %v514 = vrot.slane %v502, %v513
  %v515 = vadd.f32 %v507, %v514
  %v516 = vadd.f32 %v508, %v514
  %v517 = vadd.f32 %v509, %v514
  %v518 = vadd.f32 %v510, %v514
  %v519 = vmax.f32 %v515, 0.0
  %v520 = vmax.f32 %v516, 0.0
  %v521 = vmax.f32 %v517, 0.0
  %v522 = vmax.f32 %v518, 0.0
  %523 = vmatprep.subr.mxu0 0.0
  %524 = vmatpush1.msra.mxu0 0.0
  %525 = vmatprep.subr.mxu0 0.0
  %526 = vmatpush1.msra.mxu0 0.0
  %527 = vmatprep.subr.mxu0 0.0
  %528 = vmatpush1.msra.mxu0 0.0
  %529 = vmatprep.subr.mxu0 0.0
  %530 = vmatpush1.msra.mxu0 0.0
  %531 = vmatprep.subr.mxu0 0.0
  %532 = vmatpush1.msra.mxu0 0.0
  %533 = vmatprep.subr.mxu0 0.0
  %534 = vmatpush1.msra.mxu0 0.0
  %535 = vmatprep.subr.mxu0 0.0
  %536 = vmatpush1.msra.mxu0 0.0
  %537 = vmatprep.subr.mxu0 0.0
  %538 = vmatpush1.msra.mxu0 0.0
  %539 = vmatprep.subr.mxu0 0.0
  %540 = vmatpush1.msra.mxu0 0.0
  %541 = vmatprep.subr.mxu0 0.0
  %542 = vmatpush1.msra.mxu0 0.0
  %543 = vmatprep.subr.mxu0 0.0
  %544 = vmatpush1.msra.mxu0 0.0
  %545 = vmatprep.subr.mxu0 0.0
  %546 = vmatpush1.msra.mxu0 0.0
  %547 = vmatprep.subr.mxu0 0.0
  %548 = vmatpush1.msra.mxu0 %v522
  %549 = vmatprep.subr.mxu0 0.0
  %550 = vmatpush1.msra.mxu0 %v521
  %551 = vmatprep.subr.mxu0 0.0
  %552 = vmatpush1.msra.mxu0 %v520
  %553 = vmatprep.subr.mxu0 0.0
  %554 = vmatpush1.msra.mxu0 %v519
  %555 = vmatprep.subr.mxu0 0.0
  %556 = vmatpush2.msra.mxu0 0.0
  %557 = vmatprep.subr.mxu0 0.0
  %558 = vmatpush2.msra.mxu0 0.0
  %559 = vmatprep.subr.mxu0 0.0
  %560 = vmatpush2.msra.mxu0 0.0
  %561 = vmatprep.subr.mxu0 0.0
  %562 = vmatpush2.msra.mxu0 0.0
  %563 = vmatprep.subr.mxu0 0.0
  %564 = vmatpush2.msra.mxu0 0.0
  %565 = vmatprep.subr.mxu0 0.0
  %566 = vmatpush2.msra.mxu0 0.0
  %567 = vmatprep.subr.mxu0 0.0
  %568 = vmatpush2.msra.mxu0 0.0
  %569 = vmatprep.subr.mxu0 0.0
  %570 = vmatpush2.msra.mxu0 0.0
  %571 = vmatprep.subr.mxu0 0.0
  %572 = vmatpush2.msra.mxu0 0.0
  %573 = vmatprep.subr.mxu0 0.0
  %574 = vmatpush2.msra.mxu0 0.0
  %575 = vmatprep.subr.mxu0 0.0
  %576 = vmatpush2.msra.mxu0 0.0
  %577 = vmatprep.subr.mxu0 0.0
  %578 = vmatpush2.msra.mxu0 0.0
  %579 = vmatprep.subr.mxu0 0.0
  %580 = vmatpush2.msra.mxu0 0.0
  %581 = vmatprep.subr.mxu0 0.0
  %582 = vmatpush2.msra.mxu0 0.0
  %583 = vmatprep.subr.mxu0 0.0
  %584 = vmatpush2.msra.mxu0 0.0
  %585 = vmatprep.subr.mxu0 0.0
  %586 = vmatpush2.msra.mxu0 0.0
  %587 = vmatprep.mubr.f32.mxu0 0.0
  %588 = vmatmul.mubr.f32.gmra.mxu0 %v79
  %v589 = vpop.f32.mrf.mxu0
  %v590 = vadd.f32 0.0, %v589
  %v591 = vpop.f32.mrf.mxu0
  %592 = vmatprep.mubr.f32.mxu0 0.0
  %593 = vmatmul.mubr.f32.gmra.mxu0 %v82
  %v594 = vpop.f32.mrf.mxu0
  %v595 = vadd.f32 0.0, %v594
  %v596 = vpop.f32.mrf.mxu0
  %597 = vmatprep.mubr.f32.mxu0 0.0
  %598 = vmatmul.mubr.f32.gmra.mxu0 %v85
  %v599 = vpop.f32.mrf.mxu0
  %v600 = vadd.f32 0.0, %v599
  %v601 = vpop.f32.mrf.mxu0
  %602 = vmatprep.mubr.f32.mxu0 0.0
  %603 = vmatmul.mubr.f32.gmra.mxu0 %v88
  %v604 = vpop.f32.mrf.mxu0
  %v605 = vadd.f32 0.0, %v604
  %v606 = vpop.f32.mrf.mxu0
  %607 = vdwg.mxu0
  %608 = vmatprep.subr.mxu0 0.0
  %609 = vmatpush1.msra.mxu0 0.0
  %610 = vmatprep.subr.mxu0 0.0
  %611 = vmatpush1.msra.mxu0 0.0
  %612 = vmatprep.subr.mxu0 0.0
  %613 = vmatpush1.msra.mxu0 0.0
  %614 = vmatprep.subr.mxu0 0.0
  %615 = vmatpush1.msra.mxu0 0.0
  %616 = vmatprep.subr.mxu0 0.0
  %617 = vmatpush1.msra.mxu0 0.0
  %618 = vmatprep.subr.mxu0 0.0
  %619 = vmatpush1.msra.mxu0 0.0
  %620 = vmatprep.subr.mxu0 0.0
  %621 = vmatpush1.msra.mxu0 0.0
  %622 = vmatprep.subr.mxu0 0.0
  %623 = vmatpush1.msra.mxu0 0.0
  %624 = vmatprep.subr.mxu0 0.0
  %625 = vmatpush1.msra.mxu0 0.0
  %626 = vmatprep.subr.mxu0 0.0
  %627 = vmatpush1.msra.mxu0 0.0
  %628 = vmatprep.subr.mxu0 0.0
  %629 = vmatpush1.msra.mxu0 0.0
  %630 = vmatprep.subr.mxu0 0.0
  %631 = vmatpush1.msra.mxu0 0.0
  %632 = vmatprep.subr.mxu0 0.0
  %633 = vmatpush1.msra.mxu0 %v522
  %634 = vmatprep.subr.mxu0 0.0
  %635 = vmatpush1.msra.mxu0 %v521
  %636 = vmatprep.subr.mxu0 0.0
  %637 = vmatpush1.msra.mxu0 %v520
  %638 = vmatprep.subr.mxu0 0.0
  %639 = vmatpush1.msra.mxu0 %v519
  %640 = vmatprep.subr.mxu0 0.0
  %641 = vmatpush2.msra.mxu0 0.0
  %642 = vmatprep.subr.mxu0 0.0
  %643 = vmatpush2.msra.mxu0 0.0
  %644 = vmatprep.subr.mxu0 0.0
  %645 = vmatpush2.msra.mxu0 0.0
  %646 = vmatprep.subr.mxu0 0.0
  %647 = vmatpush2.msra.mxu0 0.0
  %648 = vmatprep.subr.mxu0 0.0
  %649 = vmatpush2.msra.mxu0 0.0
  %650 = vmatprep.subr.mxu0 0.0
  %651 = vmatpush2.msra.mxu0 0.0
  %652 = vmatprep.subr.mxu0 0.0
  %653 = vmatpush2.msra.mxu0 0.0
  %654 = vmatprep.subr.mxu0 0.0
  %655 = vmatpush2.msra.mxu0 0.0
  %656 = vmatprep.subr.mxu0 0.0
  %657 = vmatpush2.msra.mxu0 0.0
  %658 = vmatprep.subr.mxu0 0.0
  %659 = vmatpush2.msra.mxu0 0.0
  %660 = vmatprep.subr.mxu0 0.0
  %661 = vmatpush2.msra.mxu0 0.0
  %662 = vmatprep.subr.mxu0 0.0
  %663 = vmatpush2.msra.mxu0 0.0
  %664 = vmatprep.subr.mxu0 0.0
  %665 = vmatpush2.msra.mxu0 0.0
  %666 = vmatprep.subr.mxu0 0.0
  %667 = vmatpush2.msra.mxu0 0.0
  %668 = vmatprep.subr.mxu0 0.0
  %669 = vmatpush2.msra.mxu0 0.0
  %670 = vmatprep.subr.mxu0 0.0
  %671 = vmatpush2.msra.mxu0 0.0
  %672 = vmatprep.mubr.f32.mxu0 0.0
  %673 = vmatmul.mubr.f32.gmra.mxu0 %v176
  %v674 = vpop.f32.mrf.mxu0
  %v675 = vadd.f32 0.0, %v674
  %v676 = vpop.f32.mrf.mxu0
  %677 = vmatprep.mubr.f32.mxu0 0.0
  %678 = vmatmul.mubr.f32.gmra.mxu0 %v179
  %v679 = vpop.f32.mrf.mxu0
  %v680 = vadd.f32 0.0, %v679
  %v681 = vpop.f32.mrf.mxu0
  %682 = vmatprep.mubr.f32.mxu0 0.0
  %683 = vmatmul.mubr.f32.gmra.mxu0 %v182
  %v684 = vpop.f32.mrf.mxu0
  %v685 = vadd.f32 0.0, %v684
  %v686 = vpop.f32.mrf.mxu0
  %687 = vmatprep.mubr.f32.mxu0 0.0
  %688 = vmatmul.mubr.f32.gmra.mxu0 %v185
  %v689 = vpop.f32.mrf.mxu0
  %v690 = vadd.f32 0.0, %v689
  %v691 = vpop.f32.mrf.mxu0
  %692 = vdwg.mxu0
  %v693 = vpack.c.bf16 %v595, %v590
  %v694 = vpack.c.bf16 %v520, %v519
  %v695 = vpack.c.bf16 %v680, %v675
  %v696 = vpack.c.bf16 %v605, %v600
  %v697 = vpack.c.bf16 %v522, %v521
  %v698 = vpack.c.bf16 %v690, %v685
  %v699 = vld [vmem:[%s2] sm:$0xf]
  %v700 = vld [vmem:[%s2 + $0x4] sm:$0xf]
  %v701 = vld [vmem:[%s2 + $0x8] sm:$0xf]
  %v702 = vld [vmem:[%s2 + $0xc] sm:$0xf]
  %v703 = vld [vmem:[%s2 + $0x10] sm:$0xf]
  %v704 = vld [vmem:[%s2 + $0x14] sm:$0xf]
  %v705 = vld [vmem:[%s2 + $0x18] sm:$0xf]
  %v706 = vld [vmem:[%s2 + $0x1c] sm:$0xf]
  %v707 = vld [vmem:[%s2 + $0x20] sm:$0xf]
  %v708 = vld [vmem:[%s2 + $0x24] sm:$0xf]
  %v709 = vld [vmem:[%s2 + $0x28] sm:$0xf]
  %v710 = vld [vmem:[%s2 + $0x2c] sm:$0xf]
  %v711 = vld [vmem:[%s2 + $0x30] sm:$0xf]
  %v712 = vld [vmem:[%s2 + $0x34] sm:$0xf]
  %v713 = vld [vmem:[%s2 + $0x38] sm:$0xf]
  %v714 = vld [vmem:[%s2 + $0x3c] sm:$0xf]
  %v715 = vld [vmem:[%s2 + $0x40] sm:$0xf]
  %v716 = vld [vmem:[%s2 + $0x44] sm:$0xf]
  %v717 = vld [vmem:[%s2 + $0x48] sm:$0xf]
  %v718 = vld [vmem:[%s2 + $0x4c] sm:$0xf]
  %v719 = vld [vmem:[%s2 + $0x50] sm:$0xf]
  %v720 = vld [vmem:[%s2 + $0x54] sm:$0xf]
  %v721 = vld [vmem:[%s2 + $0x58] sm:$0xf]
  %v722 = vld [vmem:[%s2 + $0x5c] sm:$0xf]
  %v723 = vld [vmem:[%s2 + $0x60] sm:$0xf]
  %v724 = vld [vmem:[%s2 + $0x64] sm:$0xf]
  %v725 = vld [vmem:[%s2 + $0x68] sm:$0xf]
  %v726 = vld [vmem:[%s2 + $0x6c] sm:$0xf]
  %v727 = vld [vmem:[%s2 + $0x70] sm:$0xf]
  %v728 = vld [vmem:[%s2 + $0x74] sm:$0xf]
  %v729 = vld [vmem:[%s2 + $0x78] sm:$0xf]
  %v730 = vld [vmem:[%s2 + $0x7c] sm:$0xf]
  %v731 = vld [vmem:[%s2 + $0x80] sm:$0xf]
  %v732 = vld [vmem:[%s2 + $0x84] sm:$0xf]
  %v733 = vld [vmem:[%s2 + $0x88] sm:$0xf]
  %v734 = vld [vmem:[%s2 + $0x8c] sm:$0xf]
  %v735 = vld [vmem:[%s2 + $0x90] sm:$0xf]
  %v736 = vld [vmem:[%s2 + $0x94] sm:$0xf]
  %v737 = vld [vmem:[%s2 + $0x98] sm:$0xf]
  %v738 = vld [vmem:[%s2 + $0x9c] sm:$0xf]
  %v739 = vld [vmem:[%s2 + $0xa0] sm:$0xf]
  %v740 = vld [vmem:[%s2 + $0xa4] sm:$0xf]
  %v741 = vld [vmem:[%s2 + $0xa8] sm:$0xf]
  %v742 = vld [vmem:[%s2 + $0xac] sm:$0xf]
  %v743 = vld [vmem:[%s2 + $0xb0] sm:$0xf]
  %v744 = vld [vmem:[%s2 + $0xb4] sm:$0xf]
  %v745 = vld [vmem:[%s2 + $0xb8] sm:$0xf]
  %v746 = vld [vmem:[%s2 + $0xbc] sm:$0xf]
  %v795 = vunpack.c.l.b16 %v699
  %v796 = vunpack.c.l.b16 %v700
  %v797 = vunpack.c.l.b16 %v701
  %v798 = vunpack.c.l.b16 %v702
  %v799 = vunpack.c.l.b16 %v703
  %v800 = vunpack.c.l.b16 %v704
  %v801 = vunpack.c.l.b16 %v705
  %v802 = vunpack.c.l.b16 %v706
  %v803 = vunpack.c.l.b16 %v707
  %v804 = vunpack.c.l.b16 %v708
  %v805 = vunpack.c.l.b16 %v709
  %v806 = vunpack.c.l.b16 %v710
  %v807 = vunpack.c.l.b16 %v711
  %v808 = vunpack.c.l.b16 %v712
  %v809 = vunpack.c.l.b16 %v713
  %v810 = vunpack.c.l.b16 %v714
  %v811 = vunpack.c.l.b16 %v715
  %v812 = vunpack.c.l.b16 %v716
  %v813 = vunpack.c.l.b16 %v717
  %v814 = vunpack.c.l.b16 %v718
  %v815 = vunpack.c.l.b16 %v719
  %v816 = vunpack.c.l.b16 %v720
  %v817 = vunpack.c.l.b16 %v721
  %v818 = vunpack.c.l.b16 %v722
  %v819 = vunpack.c.l.b16 %v723
  %v820 = vunpack.c.l.b16 %v724
  %v821 = vunpack.c.l.b16 %v725
  %v822 = vunpack.c.l.b16 %v726
  %v823 = vunpack.c.l.b16 %v727
  %v824 = vunpack.c.l.b16 %v728
  %v825 = vunpack.c.l.b16 %v729
  %v826 = vunpack.c.l.b16 %v730
  %v827 = vunpack.c.l.b16 %v731
  %v828 = vunpack.c.l.b16 %v732
  %v829 = vunpack.c.l.b16 %v733
  %v830 = vunpack.c.l.b16 %v734
  %v831 = vunpack.c.l.b16 %v735
  %v832 = vunpack.c.l.b16 %v736
  %v833 = vunpack.c.l.b16 %v737
  %v834 = vunpack.c.l.b16 %v738
  %v835 = vunpack.c.l.b16 %v739
  %v836 = vunpack.c.l.b16 %v740
  %v837 = vunpack.c.l.b16 %v741
  %v838 = vunpack.c.l.b16 %v742
  %v839 = vunpack.c.l.b16 %v743
  %v840 = vunpack.c.l.b16 %v744
  %v841 = vunpack.c.l.b16 %v745
  %v842 = vunpack.c.l.b16 %v746
  %v843 = vpack.c.b16 %v796, %v795
  %v844 = vpack.c.b16 %v798, %v797
  %v845 = vpack.c.b16 %v800, %v799
  %v846 = vpack.c.b16 %v802, %v801
  %v847 = vpack.c.b16 %v804, %v803
  %v848 = vpack.c.b16 %v806, %v805
  %v849 = vpack.c.b16 %v808, %v807
  %v850 = vpack.c.b16 %v810, %v809
  %v851 = vpack.c.b16 %v812, %v811
  %v852 = vpack.c.b16 %v814, %v813
  %v853 = vpack.c.b16 %v816, %v815
  %v854 = vpack.c.b16 %v818, %v817
  %v855 = vpack.c.b16 %v820, %v819
  %v856 = vpack.c.b16 %v822, %v821
  %v857 = vpack.c.b16 %v824, %v823
  %v858 = vpack.c.b16 %v826, %v825
  %v859 = vpack.c.b16 %v828, %v827
  %v860 = vpack.c.b16 %v830, %v829
  %v861 = vpack.c.b16 %v832, %v831
  %v862 = vpack.c.b16 %v834, %v833
  %v863 = vpack.c.b16 %v836, %v835
  %v864 = vpack.c.b16 %v838, %v837
  %v865 = vpack.c.b16 %v840, %v839
  %v866 = vpack.c.b16 %v842, %v841
  %891 = vmatprep.subr.bf16.mxu0 0
  %892 = vmatpush1.bf16.msra.mxu0 %v850
  %893 = vmatprep.subr.bf16.mxu0 0
  %894 = vmatpush1.bf16.msra.mxu0 %v849
  %895 = vmatprep.subr.bf16.mxu0 0
  %896 = vmatpush1.bf16.msra.mxu0 %v848
  %897 = vmatprep.subr.bf16.mxu0 0
  %898 = vmatpush1.bf16.msra.mxu0 %v847
  %899 = vmatprep.subr.bf16.mxu0 0
  %900 = vmatpush1.bf16.msra.mxu0 %v846
  %901 = vmatprep.subr.bf16.mxu0 0
  %902 = vmatpush1.bf16.msra.mxu0 %v845
  %903 = vmatprep.subr.bf16.mxu0 0
  %904 = vmatpush1.bf16.msra.mxu0 %v844
  %905 = vmatprep.subr.bf16.mxu0 0
  %906 = vmatpush1.bf16.msra.mxu0 %v843
  %907 = vmatprep.subr.bf16.mxu0 0
  %908 = vmatpush2.bf16.msra.mxu0 %v858
  %909 = vmatprep.subr.bf16.mxu0 0
  %910 = vmatpush2.bf16.msra.mxu0 %v857
  %911 = vmatprep.subr.bf16.mxu0 0
  %912 = vmatpush2.bf16.msra.mxu0 %v856
  %913 = vmatprep.subr.bf16.mxu0 0
  %914 = vmatpush2.bf16.msra.mxu0 %v855
  %915 = vmatprep.subr.bf16.mxu0 0
  %916 = vmatpush2.bf16.msra.mxu0 %v854
  %917 = vmatprep.subr.bf16.mxu0 0
  %918 = vmatpush2.bf16.msra.mxu0 %v853
  %919 = vmatprep.subr.bf16.mxu0 0
  %920 = vmatpush2.bf16.msra.mxu0 %v852
  %921 = vmatprep.subr.bf16.mxu0 0
  %922 = vmatpush2.bf16.msra.mxu0 %v851
  %923 = vmatprep.mubr.bf16.mxu0 %v694
  %924 = vmatmul.mubr.bf16.gmra.mxu0 %v693
  %v925 = vpop.f32.mrf.mxu0
  %v926 = vadd.f32 0.0, %v925
  %v927 = vpop.f32.mrf.mxu0
  %v928 = vpop.f32.mrf.mxu0
  %v929 = vadd.f32 0.0, %v928
  %v930 = vpop.f32.mrf.mxu0
  %931 = vmatprep.mubr.bf16.mxu0 %v697
  %932 = vmatmul.mubr.bf16.gmra.mxu0 %v696
  %v933 = vpop.f32.mrf.mxu0
  %v934 = vadd.f32 0.0, %v933
  %v935 = vpop.f32.mrf.mxu0
  %v936 = vpop.f32.mrf.mxu0
  %v937 = vadd.f32 0.0, %v936
  %v938 = vpop.f32.mrf.mxu0
  %939 = vdwg.mxu0
  %940 = vmatprep.subr.bf16.mxu0 0
  %941 = vmatpush1.bf16.msra.mxu0 %v866
  %942 = vmatprep.subr.bf16.mxu0 0
  %943 = vmatpush1.bf16.msra.mxu0 %v865
  %944 = vmatprep.subr.bf16.mxu0 0
  %945 = vmatpush1.bf16.msra.mxu0 %v864
  %946 = vmatprep.subr.bf16.mxu0 0
  %947 = vmatpush1.bf16.msra.mxu0 %v863
  %948 = vmatprep.subr.bf16.mxu0 0
  %949 = vmatpush1.bf16.msra.mxu0 %v862
  %950 = vmatprep.subr.bf16.mxu0 0
  %951 = vmatpush1.bf16.msra.mxu0 %v861
  %952 = vmatprep.subr.bf16.mxu0 0
  %953 = vmatpush1.bf16.msra.mxu0 %v860
  %954 = vmatprep.subr.bf16.mxu0 0
  %955 = vmatpush1.bf16.msra.mxu0 %v859
  %956 = vmatprep.subr.bf16.mxu0 0
  %957 = vmatpush2.bf16.msra.mxu0 0
  %958 = vmatprep.subr.bf16.mxu0 0
  %959 = vmatpush2.bf16.msra.mxu0 0
  %960 = vmatprep.subr.bf16.mxu0 0
  %961 = vmatpush2.bf16.msra.mxu0 0
  %962 = vmatprep.subr.bf16.mxu0 0
  %963 = vmatpush2.bf16.msra.mxu0 0
  %964 = vmatprep.subr.bf16.mxu0 0
  %965 = vmatpush2.bf16.msra.mxu0 0
  %966 = vmatprep.subr.bf16.mxu0 0
  %967 = vmatpush2.bf16.msra.mxu0 0
  %968 = vmatprep.subr.bf16.mxu0 0
  %969 = vmatpush2.bf16.msra.mxu0 0
  %970 = vmatprep.subr.bf16.mxu0 0
  %971 = vmatpush2.bf16.msra.mxu0 0
  %972 = vmatprep.mubr.bf16.mxu0 0
  %973 = vmatmul.mubr.bf16.gmra.mxu0 %v695
  %v974 = vpop.f32.mrf.mxu0
  %v975 = vadd.f32 %v926, %v974
  %v976 = vpop.f32.mrf.mxu0
  %v977 = vpop.f32.mrf.mxu0
  %v978 = vadd.f32 %v929, %v977
  %v979 = vpop.f32.mrf.mxu0
  %980 = vmatprep.mubr.bf16.mxu0 0
  %981 = vmatmul.mubr.bf16.gmra.mxu0 %v698
  %v982 = vpop.f32.mrf.mxu0
  %v983 = vadd.f32 %v934, %v982
  %v984 = vpop.f32.mrf.mxu0
  %v985 = vpop.f32.mrf.mxu0
  %v986 = vadd.f32 %v937, %v985
  %v987 = vpop.f32.mrf.mxu0
  %988 = vdwg.mxu0
  %v989 = vadd.f32 %v975, %v978
  %v990 = vadd.f32 %v989, %v983
  %v991 = vadd.f32 %v990, %v986
  %v992 = vrot.slane %v991, 4
  %v993 = vadd.f32 %v991, %v992
  %v994 = vrot.slane %v993, 2
  %v995 = vadd.f32 %v993, %v994
  %v996 = vrot.slane %v995, 1
  %v997 = vadd.f32 %v995, %v996
  %v998 = vmul.f32 %v975, %v975
  %v999 = vmul.f32 %v978, %v978
  %v1000 = vmul.f32 %v983, %v983
  %v1001 = vmul.f32 %v986, %v986
  %v1002 = vadd.f32 %v998, %v999
  %v1003 = vadd.f32 %v1002, %v1000
  %v1004 = vadd.f32 %v1003, %v1001
  %v1005 = vrot.slane %v1004, 4
  %v1006 = vadd.f32 %v1004, %v1005
  %v1007 = vrot.slane %v1006, 2
  %v1008 = vadd.f32 %v1006, %v1007
  %v1009 = vrot.slane %v1008, 1
  %v1010 = vadd.f32 %v1008, %v1009
  %1011 = vrot.lane.b32.xlu0 %v997, 8
  %v1012 = vpop.permute.xlu0 %1011
  %v1013 = vadd.f32 %v997, %v1012
  %1014 = vrot.lane.b32.xlu0 %v1013, 16
  %v1015 = vpop.permute.xlu0 %1014
  %v1016 = vadd.f32 %v1013, %v1015
  %1017 = vrot.lane.b32.xlu0 %v1016, 32
  %v1018 = vpop.permute.xlu0 %1017
  %v1019 = vadd.f32 %v1016, %v1018
  %1020 = vrot.lane.b32.xlu0 %v1019, 64
  %v1021 = vpop.permute.xlu0 %1020
  %v1022 = vadd.f32 %v1019, %v1021
  %v1023 = vmul.f32 %v1022, 0.001953125
  %1024 = vrot.lane.b32.xlu0 %v1010, 8
  %v1025 = vpop.permute.xlu0 %1024
  %v1026 = vadd.f32 %v1010, %v1025
  %1027 = vrot.lane.b32.xlu0 %v1026, 16
  %v1028 = vpop.permute.xlu0 %1027
  %v1029 = vadd.f32 %v1026, %v1028
  %1030 = vrot.lane.b32.xlu0 %v1029, 32
  %v1031 = vpop.permute.xlu0 %1030
  %v1032 = vadd.f32 %v1029, %v1031
  %1033 = vrot.lane.b32.xlu0 %v1032, 64
  %v1034 = vpop.permute.xlu0 %1033
  %v1035 = vadd.f32 %v1032, %v1034
  %v1036 = vmul.f32 %v1035, 0.001953125
  %v1037 = vmul.f32 %v1023, %v1023
  %v1038 = vsub.f32 %v1036, %v1037
  %v1039 = vadd.f32 %v1038, 1e-05
  %v1040 = vrsqrt.pop %v1039
  %v1041 = vmul.f32 %v71, %v1040
  %v1042 = vmul.f32 %v1023, %v1041
  %v1043 = vsub.f32 %v72, %v1042
  %v1044 = vlaneseq
  %v1045 = vshrl.u32 %v1044, 7
  %v1046 = vsub.s32 0, %v1045
  %v1047 = vrot.slane %v1041, %v1046
  %v1048 = vmul.f32 %v975, %v1047
  %v1049 = vmul.f32 %v978, %v1047
  %v1050 = vmul.f32 %v983, %v1047
  %v1051 = vmul.f32 %v986, %v1047
  %v1052 = vlaneseq
  %v1053 = vshrl.u32 %v1052, 7
  %v1054 = vsub.s32 0, %v1053
  %v1055 = vrot.slane %v1043, %v1054
  %v1056 = vadd.f32 %v1048, %v1055
  %v1057 = vadd.f32 %v1049, %v1055
  %v1058 = vadd.f32 %v1050, %v1055
  %v1059 = vadd.f32 %v1051, %v1055
  %v1060 = vmax.f32 %v1056, 0.0
  %v1061 = vmax.f32 %v1057, 0.0
  %v1062 = vmax.f32 %v1058, 0.0
  %v1063 = vmax.f32 %v1059, 0.0
  %1064 = vst [vmem:[%s4] sm:$0xff] %v1060
  %1065 = vst [vmem:[%s4 + $0x8] sm:$0xff] %v1061
  %1066 = vst [vmem:[%s4 + $0x10] sm:$0xff] %v1062
  %1067 = vst [vmem:[%s4 + $0x18] sm:$0xff] %v1063
  // Predicated region
  $region18: #{double_conv.1} parent=0 // pred_check
    _
  $region19: #{double_conv.1} parent=0 // pred_check_branch
    %1069 = sbr.rel (0) target = $region21
  $region20: #{double_conv.1} parent=0 // pred_region
    _
  $region21: #{double_conv.1} parent=0 // pred_fallthru
    _
  // Predicated region
  $region22: #{double_conv.1} parent=0 // pred_check
    _
  $region23: #{double_conv.1} parent=0 // pred_check_branch
    %1071 = sbr.rel (0) target = $region25
  $region24: #{double_conv.1} parent=0 // pred_region
    _
  $region25: #{double_conv.1} parent=0 // pred_fallthru
    _

</llo_original>
